<compile_context>
chip_gen: v7x
topology: tpu7x:2x2x1
jax: 0.10.0
libtpu: 0.0.40
codegen_flags: <defaults>
</compile_context>

<pallas_src>
import jax
import jax.numpy as jnp
from jax import lax
from jax.experimental import pallas as pl
from jax.experimental.pallas import tpu as pltpu


def _masked_regression_kernel(preds_ref, labels_ref, masks_ref, out_ref):
    # preds_ref : (TL, H)     input dtype
    # labels_ref: (F, TL, H)  input dtype
    # masks_ref : (TL, 1)     float32
    # out_ref   : (1, 1)      float32  -- per-block partial masked-loss sum
    p = preds_ref[...].astype(jnp.float32)           # upcast once after load
    m = masks_ref[...]                                # (TL, 1) f32
    n_fonts = labels_ref.shape[0]
    tl = p.shape[0]

    def per_font(f, min_sq):
        lab = labels_ref[f].astype(jnp.float32)       # (TL, H), one font slice
        d = p - lab
        sq = jnp.sum(d * d, axis=-1, keepdims=True)   # (TL, 1) squared L2
        return jnp.minimum(min_sq, sq)

    min_sq = lax.fori_loop(
        0, n_fonts, per_font,
        jnp.full((tl, 1), jnp.inf, dtype=jnp.float32),
        unroll=True)

    # sqrt only on the per-position minimum (sqrt is monotonic -> identical)
    masked = jnp.sqrt(min_sq) * m                     # (TL, 1)
    out_ref[...] = jnp.sum(masked).reshape(1, 1)


def masked_regression(preds, labels, masks, *, block_len=None):
    """preds: (B,L,H), labels: (B,F,L,H), masks: (B,L) -> scalar f32 loss."""
    B, L, H = preds.shape
    Bf, F, Lf, Hf = labels.shape
    assert (B, L, H) == (Bf, Lf, Hf), "shape mismatch"

    # mask-nonzero count done in plain JAX (removed from the kernel)
    length = jnp.sum(masks != 0).astype(jnp.float32)

    # length tile: multiple of 8, sized so the labels block is ~4 MiB
    if block_len is None:
        bytes_per_row = F * H * jnp.dtype(labels.dtype).itemsize
        target_bytes = 4 * 1024 * 1024
        tl = max(8, target_bytes // max(bytes_per_row, 1))
    else:
        tl = block_len
    tl = int(min(tl, pl.cdiv(L, 8) * 8))
    tl = max(8, (tl // 8) * 8)

    n_l = pl.cdiv(L, tl)
    L_pad = n_l * tl

    masks_f = masks.astype(jnp.float32)
    if L_pad != L:
        pad = L_pad - L
        # zero-padding is neutral: dist=0 at padded rows and mask=0 there
        preds = jnp.pad(preds, ((0, 0), (0, pad), (0, 0)))
        labels = jnp.pad(labels, ((0, 0), (0, 0), (0, pad), (0, 0)))
        masks_f = jnp.pad(masks_f, ((0, 0), (0, pad)))
    masks3 = masks_f.reshape(B, L_pad, 1)

    partials = pl.pallas_call(
        _masked_regression_kernel,
        out_shape=jax.ShapeDtypeStruct((B, n_l, 1, 1), jnp.float32),
        grid_spec=pltpu.PrefetchScalarGridSpec(
            num_scalar_prefetch=0,
            grid=(B, n_l),
            in_specs=[
                pl.BlockSpec((None, tl, H), lambda b, l: (b, l, 0)),
                pl.BlockSpec((None, F, tl, H), lambda b, l: (b, 0, l, 0)),
                pl.BlockSpec((None, tl, 1), lambda b, l: (b, l, 0)),
            ],
            out_specs=pl.BlockSpec((None, None, 1, 1),
                                   lambda b, l: (b, l, 0, 0)),
        ),
        compiler_params=pltpu.CompilerParams(
            # independent per-block partial sums -> both axes parallel
            # (sharded across the two TensorCores on v7x)
            dimension_semantics=("parallel", "parallel"),
            vmem_limit_bytes=32 * 1024 * 1024,
        ),
    )(preds, labels, masks3)

    # final reduction + divide in JAX (matches losses.sum() / len(nonzero))
    return jnp.sum(partials) / length


def masked_regression_ref(preds, labels, masks):
    """Pure-JAX reference reproducing the PyTorch forward exactly."""
    preds_stack = jnp.broadcast_to(preds[:, None, :, :], labels.shape)
    l2_dist = jnp.linalg.norm(
        preds_stack.astype(jnp.float32) - labels.astype(jnp.float32), axis=3)
    losses = jnp.min(l2_dist, axis=1)                # (B, L)
    losses = losses * masks.astype(jnp.float32)
    length = jnp.sum(masks != 0)
    return jnp.sum(losses) / length


if __name__ == "__main__":
    key = jax.random.PRNGKey(0)
    k1, k2, k3 = jax.random.split(key, 3)

    batch, n_fonts, max_len, hidden = 2, 4, 8, 32
    preds = jax.random.normal(k1, (batch, max_len, hidden), dtype=jnp.float32)
    labels = jax.random.normal(k2, (batch, n_fonts, max_len, hidden),
                               dtype=jnp.float32)
    # binary masks with some zeros (but guaranteed nonzero count)
    masks = (jax.random.uniform(k3, (batch, max_len)) > 0.3).astype(jnp.float32)
    masks = masks.at[:, 0].set(1.0)

    loss = masked_regression(preds, labels, masks)
    jax.block_until_ready(loss)

    ref = masked_regression_ref(preds, labels, masks)
    assert jnp.allclose(loss, ref, rtol=1e-5, atol=1e-6), (loss, ref)

    print("KERNEL_OK")
</pallas_src>

<mosaic_0001>
module attributes {stable_mosaic.version = 11 : i64} {
  func.func @_masked_regression_kernel(%arg0: i32, %arg1: i32, %arg2: memref<1x8x32xf32, #tpu.memory_space<vmem>>, %arg3: memref<1x4x8x32xf32, #tpu.memory_space<vmem>>, %arg4: memref<1x8x1xf32, #tpu.memory_space<vmem>>, %arg5: memref<1x1x1x1xf32, #tpu.memory_space<vmem>>) attributes {dimension_semantics = [#tpu.dimension_semantics<parallel>, #tpu.dimension_semantics<parallel>], iteration_bounds = array<i64: 2, 1>, scalar_prefetch = 0 : i64, scratch_operands = 0 : i64, tpu.core_type = #tpu.core_type<tc>, window_params = [{transform_indices = @transform_0, window_bounds = array<i64: 1, 8, 32>}, {transform_indices = @transform_1, window_bounds = array<i64: 1, 4, 8, 32>}, {transform_indices = @transform_2, window_bounds = array<i64: 1, 8, 1>}, {transform_indices = @transform_3, window_bounds = array<i64: 1, 1, 1, 1>}]} {
    %c0 = arith.constant 0 : index
    %c0_0 = arith.constant 0 : index
    %c0_1 = arith.constant 0 : index
    %0 = vector.load %arg2[%c0, %c0_0, %c0_1] : memref<1x8x32xf32, #tpu.memory_space<vmem>>, vector<1x8x32xf32>
    %1 = vector.shape_cast %0 : vector<1x8x32xf32> to vector<8x32xf32>
    %c0_2 = arith.constant 0 : index
    %c0_3 = arith.constant 0 : index
    %c0_4 = arith.constant 0 : index
    %2 = vector.load %arg4[%c0_2, %c0_3, %c0_4] : memref<1x8x1xf32, #tpu.memory_space<vmem>>, vector<1x8x1xf32>
    %3 = vector.shape_cast %2 : vector<1x8x1xf32> to vector<8x1xf32>
    %cst = arith.constant 0x7F800000 : f32
    %4 = vector.broadcast %cst : f32 to vector<8x1xf32>
    %c0_i32 = arith.constant 0 : i32
    %c0_5 = arith.constant 0 : index
    %5 = arith.index_cast %c0_i32 : i32 to index
    %c0_6 = arith.constant 0 : index
    %c0_7 = arith.constant 0 : index
    %6 = vector.load %arg3[%c0_5, %5, %c0_6, %c0_7] : memref<1x4x8x32xf32, #tpu.memory_space<vmem>>, vector<1x1x8x32xf32>
    %7 = vector.shape_cast %6 : vector<1x1x8x32xf32> to vector<8x32xf32>
    %8 = arith.subf %1, %7 : vector<8x32xf32>
    %9 = arith.mulf %8, %8 : vector<8x32xf32>
    %cst_8 = arith.constant dense<0.000000e+00> : vector<8xf32>
    %10 = vector.multi_reduction <add>, %9, %cst_8 [1] : vector<8x32xf32> to vector<8xf32>
    %11 = vector.shape_cast %10 : vector<8xf32> to vector<8x1xf32>
    %12 = arith.minimumf %4, %11 : vector<8x1xf32>
    %c1_i32 = arith.constant 1 : i32
    %c0_9 = arith.constant 0 : index
    %13 = arith.index_cast %c1_i32 : i32 to index
    %c0_10 = arith.constant 0 : index
    %c0_11 = arith.constant 0 : index
    %14 = vector.load %arg3[%c0_9, %13, %c0_10, %c0_11] : memref<1x4x8x32xf32, #tpu.memory_space<vmem>>, vector<1x1x8x32xf32>
    %15 = vector.shape_cast %14 : vector<1x1x8x32xf32> to vector<8x32xf32>
    %16 = arith.subf %1, %15 : vector<8x32xf32>
    %17 = arith.mulf %16, %16 : vector<8x32xf32>
    %cst_12 = arith.constant dense<0.000000e+00> : vector<8xf32>
    %18 = vector.multi_reduction <add>, %17, %cst_12 [1] : vector<8x32xf32> to vector<8xf32>
    %19 = vector.shape_cast %18 : vector<8xf32> to vector<8x1xf32>
    %20 = arith.minimumf %12, %19 : vector<8x1xf32>
    %c2_i32 = arith.constant 2 : i32
    %c0_13 = arith.constant 0 : index
    %21 = arith.index_cast %c2_i32 : i32 to index
    %c0_14 = arith.constant 0 : index
    %c0_15 = arith.constant 0 : index
    %22 = vector.load %arg3[%c0_13, %21, %c0_14, %c0_15] : memref<1x4x8x32xf32, #tpu.memory_space<vmem>>, vector<1x1x8x32xf32>
    %23 = vector.shape_cast %22 : vector<1x1x8x32xf32> to vector<8x32xf32>
    %24 = arith.subf %1, %23 : vector<8x32xf32>
    %25 = arith.mulf %24, %24 : vector<8x32xf32>
    %cst_16 = arith.constant dense<0.000000e+00> : vector<8xf32>
    %26 = vector.multi_reduction <add>, %25, %cst_16 [1] : vector<8x32xf32> to vector<8xf32>
    %27 = vector.shape_cast %26 : vector<8xf32> to vector<8x1xf32>
    %28 = arith.minimumf %20, %27 : vector<8x1xf32>
    %c3_i32 = arith.constant 3 : i32
    %c0_17 = arith.constant 0 : index
    %29 = arith.index_cast %c3_i32 : i32 to index
    %c0_18 = arith.constant 0 : index
    %c0_19 = arith.constant 0 : index
    %30 = vector.load %arg3[%c0_17, %29, %c0_18, %c0_19] : memref<1x4x8x32xf32, #tpu.memory_space<vmem>>, vector<1x1x8x32xf32>
    %31 = vector.shape_cast %30 : vector<1x1x8x32xf32> to vector<8x32xf32>
    %32 = arith.subf %1, %31 : vector<8x32xf32>
    %33 = arith.mulf %32, %32 : vector<8x32xf32>
    %cst_20 = arith.constant dense<0.000000e+00> : vector<8xf32>
    %34 = vector.multi_reduction <add>, %33, %cst_20 [1] : vector<8x32xf32> to vector<8xf32>
    %35 = vector.shape_cast %34 : vector<8xf32> to vector<8x1xf32>
    %36 = arith.minimumf %28, %35 : vector<8x1xf32>
    %c4_i32 = arith.constant 4 : i32
    %37 = math.sqrt %36 : vector<8x1xf32>
    %38 = arith.mulf %37, %3 : vector<8x1xf32>
    %39 = vector.shape_cast %38 : vector<8x1xf32> to vector<1x8x1xf32>
    %cst_21 = arith.constant dense<0.000000e+00> : vector<1xf32>
    %40 = vector.multi_reduction <add>, %39, %cst_21 [1, 2] : vector<1x8x1xf32> to vector<1xf32>
    %41 = vector.shape_cast %40 : vector<1xf32> to vector<1x1x1xf32>
    %42 = vector.extract %41[0, 0, 0] : f32 from vector<1x1x1xf32>
    %43 = vector.broadcast %42 : f32 to vector<1x1xf32>
    %c0_22 = arith.constant 0 : index
    %c0_23 = arith.constant 0 : index
    %c0_24 = arith.constant 0 : index
    %c0_25 = arith.constant 0 : index
    %44 = vector.load %arg5[%c0_22, %c0_23, %c0_24, %c0_25] : memref<1x1x1x1xf32, #tpu.memory_space<vmem>>, vector<1x1x1x1xf32>
    %45 = vector.shape_cast %44 : vector<1x1x1x1xf32> to vector<1x1xf32>
    %46 = vector.shape_cast %43 : vector<1x1xf32> to vector<1x1x1x1xf32>
    tpu.vector_store %arg5[%c0_22, %c0_23, %c0_24, %c0_25], %46 {strides = array<i32>} : memref<1x1x1x1xf32, #tpu.memory_space<vmem>>, vector<1x1x1x1xf32>,
    return
  }
  func.func @transform_0(%arg0: i32, %arg1: i32) -> (i32, i32, i32) {
    %c0_i32 = arith.constant 0 : i32
    %c0_i32_0 = arith.constant 0 : i32
    return %arg0, %arg1, %c0_i32 : i32, i32, i32
  }
  func.func @transform_1(%arg0: i32, %arg1: i32) -> (i32, i32, i32, i32) {
    %c0_i32 = arith.constant 0 : i32
    %c0_i32_0 = arith.constant 0 : i32
    %c0_i32_1 = arith.constant 0 : i32
    return %arg0, %c0_i32, %arg1, %c0_i32_0 : i32, i32, i32, i32
  }
  func.func @transform_2(%arg0: i32, %arg1: i32) -> (i32, i32, i32) {
    %c0_i32 = arith.constant 0 : i32
    %c0_i32_0 = arith.constant 0 : i32
    return %arg0, %arg1, %c0_i32 : i32, i32, i32
  }
  func.func @transform_3(%arg0: i32, %arg1: i32) -> (i32, i32, i32, i32) {
    %c0_i32 = arith.constant 0 : i32
    %c0_i32_0 = arith.constant 0 : i32
    %c0_i32_1 = arith.constant 0 : i32
    return %arg0, %arg1, %c0_i32, %c0_i32_0 : i32, i32, i32, i32
  }
}

</mosaic_0001>

<llo_original>
// kernel: tpu_custom_call.1
$region0: #{tpu_custom_call.1}
  #allocation0 [shape = 'u32[]', space=smem, size = 0x4, offset = 0x4, fixed_abs, tag = 'smem constant byte address 0x4 - core index']
  #allocation1 [shape = 'u32[144,128]{1,0:T(1,128)}', space=vmem, size = 0x12000, scoped, tag = 'internal scratch']
  %s0 = inlined_call_operand.vmem [shape: f32[2,8,32], index: 0, kind: input, shape index: {}]
  %s1 = inlined_call_operand.hbm [shape: f32[2,4,8,32], index: 1, kind: input, shape index: {}]
  %s2 = inlined_call_operand.vmem [shape: f32[2,8,1], index: 2, kind: input, shape index: {}]
  %s3 = inlined_call_operand.vmem [shape: f32[2,1,1,1], index: 3, kind: output, shape index: {}]
  %s4 = sld [smem:[#allocation0]]
  $region49: #{tpu_custom_call.1} parent=0
    _
  %s6 = ssub.s32 1, %s4
  %s7 = scalar_select 0, %s6, %s4
  $region1: #{tpu_custom_call.1} parent=0
    #allocation2 [shape = 'u8[32768]{0}', space=vmem, size = 0x8000, scoped, tag = 'input window, operand 1']
    #allocation3 [shape = 's32[2]{0}', space=sflag, size = 0x8, scoped, tag = 'scoped memory for tpu_custom_call.1']
    %8 = vsyncpa [#allocation3], 0
    %s9 = scalar_lea.sflag [#allocation3], 1
    %10 = vsyncpa %s9, 0
    loop: start=0, step=1, limit=4
    $region2: #{tpu_custom_call.1} parent=1 // loop_pre_header
      _
    $region3: #{tpu_custom_call.1} parent=1 // loop_header
      %s12 = sphi 0, %s16
      %p13 = scmp.ge.s32.totalorder %s12, 4
      %s19 = sphi 0, %s31
      %s20 = sphi 0, %s27
      %s21 = sphi 0, %s19
      %s22 = sphi 0, %s20
      %s23 = sphi 0, %s21
      %s24 = sphi 0, %s22
      %s36 = sphi 0, %s38
      %s39 = sphi 0, %s36
      %s40 = sphi 0, %s39
      %s56 = sphi 0, %s40
      %s64 = sphi 0, %s66
      %s67 = sphi 0, %s64
      %s68 = sphi 0, %s67
      %s84 = sphi 0, %s68
      %s92 = sphi 0, %s94
      %s95 = sphi 0, %s92
      %s96 = sphi 0, %s95
      %s112 = sphi 0, %s96
      %s120 = sphi 0, %s122
      %s123 = sphi 0, %s120
      %s124 = sphi 0, %s123
      %s140 = sphi 0, %s124
    $region4: #{tpu_custom_call.1} parent=1 // loop_header_branch
      %15 = sbr.rel (%p13) target = $region8
    $region5: #{tpu_custom_call.1} parent=1 // loop_body
      %s17 = ssub.s32 %s12, 1
      %s18 = ssub.s32 %s12, 2
      %s25 = sadd.s32 1, %s20
      %p26 = scmp.ge.s32.totalorder %s25, 1
      %s27 = scalar_select %p26, 0, %s25
      %s28 = sadd.s32 1, %s19
      %s29 = scalar_select %p26, %s28, %s19
      %p30 = scmp.ge.s32.totalorder %s29, 2
      %s31 = scalar_select %p30, 0, %s29
      %s32 = ssub.s32 %s19, %s31
      %s33 = ssub.s32 %s20, %s27
      %s34 = sor.u32 %s32, %s33
      %p35 = scmp.eq.s32.totalorder %s34, 0
      %s37 = sadd.s32 %s36, 1
      %s38 = scalar_select %p35, %s36, %s37
      %p41 = pneg %p35
      %p42 = scmp.eq.s32.totalorder %s12, 1
      %p43 = por %p41, %p42
      %p44 = scmp.ne.s32.totalorder %s36, %s39
      %p45 = scmp.eq.s32.totalorder %s12, 0
      %p46 = por %p44, %p45
      %p47 = scmp.ne.s32.totalorder %s36, %s39
      %p48 = scmp.eq.s32.totalorder %s17, 1
      %p49 = por %p47, %p48
      %p50 = scmp.ne.s32.totalorder %s39, %s40
      %p51 = scmp.eq.s32.totalorder %s17, 0
      %p52 = por %p50, %p51
      %p53 = scmp.ne.s32.totalorder %s39, %s40
      %p54 = scmp.eq.s32.totalorder %s18, 1
      %p55 = por %p53, %p54
      %p57 = scmp.ne.s32.totalorder %s40, %s56
      %p58 = scmp.eq.s32.totalorder %s18, 0
      %p59 = por %p57, %p58
      %s60 = ssub.s32 %s19, %s31
      %s61 = ssub.s32 %s20, %s27
      %s62 = sor.u32 %s60, %s61
      %p63 = scmp.eq.s32.totalorder %s62, 0
      %s65 = sadd.s32 %s64, 1
      %s66 = scalar_select %p63, %s64, %s65
      %p69 = pneg %p63
      %p70 = scmp.eq.s32.totalorder %s12, 1
      %p71 = por %p69, %p70
      %p72 = scmp.ne.s32.totalorder %s64, %s67
      %p73 = scmp.eq.s32.totalorder %s12, 0
      %p74 = por %p72, %p73
      %p75 = scmp.ne.s32.totalorder %s64, %s67
      %p76 = scmp.eq.s32.totalorder %s17, 1
      %p77 = por %p75, %p76
      %p78 = scmp.ne.s32.totalorder %s67, %s68
      %p79 = scmp.eq.s32.totalorder %s17, 0
      %p80 = por %p78, %p79
      %p81 = scmp.ne.s32.totalorder %s67, %s68
      %p82 = scmp.eq.s32.totalorder %s18, 1
      %p83 = por %p81, %p82
      %p85 = scmp.ne.s32.totalorder %s68, %s84
      %p86 = scmp.eq.s32.totalorder %s18, 0
      %p87 = por %p85, %p86
      %s88 = ssub.s32 %s19, %s31
      %s89 = ssub.s32 %s20, %s27
      %s90 = sor.u32 %s88, %s89
      %p91 = scmp.eq.s32.totalorder %s90, 0
      %s93 = sadd.s32 %s92, 1
      %s94 = scalar_select %p91, %s92, %s93
      %p97 = pneg %p91
      %p98 = scmp.eq.s32.totalorder %s12, 1
      %p99 = por %p97, %p98
      %p100 = scmp.ne.s32.totalorder %s92, %s95
      %p101 = scmp.eq.s32.totalorder %s12, 0
      %p102 = por %p100, %p101
      %p103 = scmp.ne.s32.totalorder %s92, %s95
      %p104 = scmp.eq.s32.totalorder %s17, 1
      %p105 = por %p103, %p104
      %p106 = scmp.ne.s32.totalorder %s95, %s96
      %p107 = scmp.eq.s32.totalorder %s17, 0
      %p108 = por %p106, %p107
      %p109 = scmp.ne.s32.totalorder %s95, %s96
      %p110 = scmp.eq.s32.totalorder %s18, 1
      %p111 = por %p109, %p110
      %p113 = scmp.ne.s32.totalorder %s96, %s112
      %p114 = scmp.eq.s32.totalorder %s18, 0
      %p115 = por %p113, %p114
      %s116 = ssub.s32 %s19, %s31
      %s117 = ssub.s32 %s20, %s27
      %s118 = sor.u32 %s116, %s117
      %p119 = scmp.eq.s32.totalorder %s118, 0
      %s121 = sadd.s32 %s120, 1
      %s122 = scalar_select %p119, %s120, %s121
      %p125 = pneg %p119
      %p126 = scmp.eq.s32.totalorder %s12, 1
      %p127 = por %p125, %p126
      %p128 = scmp.ne.s32.totalorder %s120, %s123
      %p129 = scmp.eq.s32.totalorder %s12, 0
      %p130 = por %p128, %p129
      %p131 = scmp.ne.s32.totalorder %s120, %s123
      %p132 = scmp.eq.s32.totalorder %s17, 1
      %p133 = por %p131, %p132
      %p134 = scmp.ne.s32.totalorder %s123, %s124
      %p135 = scmp.eq.s32.totalorder %s17, 0
      %p136 = por %p134, %p135
      %p137 = scmp.ne.s32.totalorder %s123, %s124
      %p138 = scmp.eq.s32.totalorder %s18, 1
      %p139 = por %p137, %p138
      %p141 = scmp.ne.s32.totalorder %s124, %s140
      %p142 = scmp.eq.s32.totalorder %s18, 0
      %p143 = por %p141, %p142
      %p144 = scmp.le.s32.totalorder 1, %s12
      %p145 = scmp.lt.s32.totalorder %s12, 3
      %p146 = pnand %p144, %p145
      %p147 = pneg %p146
      // Predicated region
      $region9: #{tpu_custom_call.1} parent=5 // pred_check
        _
      $region10: #{tpu_custom_call.1} parent=5 // pred_check_branch
        %149 = sbr.rel (%p146) target = $region12
      $region11: #{tpu_custom_call.1} parent=5 // pred_region
        %s150 = ssub.s32 %s12, 1
      $region12: #{tpu_custom_call.1} parent=5 // pred_fallthru
        _
      %p151 = scmp.lt.s32.totalorder %s12, 2
      // Predicated region
      $region13: #{tpu_custom_call.1} parent=5 // pred_check
        %p152 = pneg %p151
      $region14: #{tpu_custom_call.1} parent=5 // pred_check_branch
        %154 = sbr.rel (%p152) target = $region16
      $region15: #{tpu_custom_call.1} parent=5 // pred_region
        // Predicated region
        $region17: #{tpu_custom_call.1} parent=15 // pred_check
          %p155 = pneg %p46
        $region18: #{tpu_custom_call.1} parent=15 // pred_check_branch
          %157 = sbr.rel (%p155) target = $region20
        $region19: #{tpu_custom_call.1} parent=15 // pred_region
          %p158 = scmp.lt.s32.totalorder %s19, 1
          %s159 = scalar_select %p158, %s19, 1
          %p160 = scmp.lt.s32.totalorder %s20, 0
          %s161 = scalar_select %p160, %s20, 0
          %s162 = sadd.s32 %s161, %s159
          %s163 = smul.addr %s162, 8
          %s164 = scalar_lea.vmem %s0, %s163
        $region20: #{tpu_custom_call.1} parent=15 // pred_fallthru
          _
        // Predicated region
        $region21: #{tpu_custom_call.1} parent=15 // pred_check
          %p165 = pneg %p74
        $region22: #{tpu_custom_call.1} parent=15 // pred_check_branch
          %167 = sbr.rel (%p165) target = $region24
        $region23: #{tpu_custom_call.1} parent=15 // pred_region
          %s168 = sand.u32 %s64, 1
          %s169 = scalar_lea.sflag [#allocation3], %s168
          %s170 = sand.u32 %s64, 1
          %s171 = smul.addr %s170, 32
          %s172 = scalar_lea.vmem [#allocation2], %s171
          %s174 = ssub.s32 512, 512
          %175 = vsyncadd %s169, %s174
          %s176 = smul.addr %s19, 4
          %s177 = sadd.s32 %s20, %s176
          %s178 = smul.addr %s177, 128
          %s179 = scalar_lea.hbm %s1, %s178
          %s180 = sshll.u32 %s172, 4
          %s181 = int_to_ptr.vmem [resolvable:$true] %s180
          %186 = dma.hbm_to_vmem [thread:$0]  %s179, 512, %s181, %s169, 128, 128, 8
        $region24: #{tpu_custom_call.1} parent=15 // pred_fallthru
          _
        // Predicated region
        $region25: #{tpu_custom_call.1} parent=15 // pred_check
          %p187 = pneg %p102
        $region26: #{tpu_custom_call.1} parent=15 // pred_check_branch
          %189 = sbr.rel (%p187) target = $region28
        $region27: #{tpu_custom_call.1} parent=15 // pred_region
          %p190 = scmp.lt.s32.totalorder %s19, 1
          %s191 = scalar_select %p190, %s19, 1
          %p192 = scmp.lt.s32.totalorder %s20, 0
          %s193 = scalar_select %p192, %s20, 0
          %s194 = sadd.s32 %s193, %s191
          %s195 = smul.addr %s194, 8
          %s196 = scalar_lea.vmem %s2, %s195
        $region28: #{tpu_custom_call.1} parent=15 // pred_fallthru
          _
      $region16: #{tpu_custom_call.1} parent=5 // pred_fallthru
        _
      %p197 = scmp.le.s32.totalorder 1, %s12
      %p198 = scmp.lt.s32.totalorder %s12, 3
      %p199 = pnand %p197, %p198
      %p200 = pneg %p199
      // Predicated region
      $region29: #{tpu_custom_call.1} parent=5 // pred_check
        _
      $region30: #{tpu_custom_call.1} parent=5 // pred_check_branch
        %202 = sbr.rel (%p199) target = $region32
      $region31: #{tpu_custom_call.1} parent=5 // pred_region
        %s203 = ssub.s32 %s12, 1
        %s204 = sand.u32 %s67, 1
        %s205 = scalar_lea.sflag [#allocation3], %s204
        %s206 = sand.u32 %s67, 1
        %s207 = smul.addr %s206, 32
        %s208 = scalar_lea.vmem [#allocation2], %s207
        // Predicated region
        $region33: #{tpu_custom_call.1} parent=31 // pred_check
          %p209 = pneg %p80
        $region34: #{tpu_custom_call.1} parent=31 // pred_check_branch
          %211 = sbr.rel (%p209) target = $region36
        $region35: #{tpu_custom_call.1} parent=31 // pred_region
          %212 = dma.done %s205, 512
        $region36: #{tpu_custom_call.1} parent=31 // pred_fallthru
          _
        %p213 = scmp.lt.s32.totalorder %s21, 1
        %s214 = scalar_select %p213, %s21, 1
        %p215 = scmp.lt.s32.totalorder %s22, 0
        %s216 = scalar_select %p215, %s22, 0
        %s217 = sadd.s32 %s216, %s214
        %s218 = smul.addr %s217, 8
        %s219 = scalar_lea.vmem %s0, %s218
        %p220 = pneg %p52
        %p221 = pneg %p49
        %s222 = sand.u32 %s67, 1
        %s223 = scalar_lea.sflag [#allocation3], %s222
        %s224 = sand.u32 %s67, 1
        %s225 = smul.addr %s224, 32
        %s226 = scalar_lea.vmem [#allocation2], %s225
        %p227 = pneg %p80
        %p228 = pneg %p77
        %p229 = scmp.lt.s32.totalorder %s21, 1
        %s230 = scalar_select %p229, %s21, 1
        %p231 = scmp.lt.s32.totalorder %s22, 0
        %s232 = scalar_select %p231, %s22, 0
        %s233 = sadd.s32 %s232, %s230
        %s234 = smul.addr %s233, 8
        %s235 = scalar_lea.vmem %s2, %s234
        %p236 = pneg %p108
        %p237 = pneg %p105
        %p238 = pneg %p136
        %p239 = pneg %p133
        %p240 = scmp.lt.s32.totalorder %s21, 1
        %s241 = scalar_select %p240, %s21, 1
        %p242 = scmp.lt.s32.totalorder %s22, 0
        %s243 = scalar_select %p242, %s22, 0
        %s244 = sadd.s32 %s243, %s241
        %s245 = scalar_lea.vmem %s3, %s244
        %p246 = scmp.lt.s32.totalorder %s21, 1
        %s247 = scalar_select %p246, %s21, 1
        %p248 = scmp.lt.s32.totalorder %s22, 0
        %s249 = scalar_select %p248, %s22, 0
        %s250 = sadd.s32 %s249, %s247
        %s251 = smul.addr %s250, 8
        %s252 = scalar_lea.vmem %s0, %s251
        %p253 = scmp.lt.s32.totalorder %s21, 1
        %s254 = scalar_select %p253, %s21, 1
        %p255 = scmp.lt.s32.totalorder %s22, 0
        %s256 = scalar_select %p255, %s22, 0
        %s257 = sadd.s32 %s256, %s254
        %s258 = smul.addr %s257, 8
        %s259 = scalar_lea.vmem %s2, %s258
        %p260 = scmp.lt.s32.totalorder %s21, 1
        %s261 = scalar_select %p260, %s21, 1
        %p262 = scmp.lt.s32.totalorder %s22, 0
        %s263 = scalar_select %p262, %s22, 0
        %s264 = sadd.s32 %s263, %s261
        %s265 = scalar_lea.vmem %s3, %s264
        %v266 = vld [vmem:[%s252] sm:$0xff]
        %v267 = vld [vmem:[%s259] sm:$0xff]
        %v268 = vld [vmem:[%s208] sm:$0xff]
        %v269 = vsub.f32 %v266, %v268
        %v270 = vmul.f32 %v269, %v269
        %vm271 = vcmask 261120
        %v272 = vsel %vm271, %v270, 0.0
        %273 = vadd.xlane.f32.xlu0 %v272
        %v274 = vpop.xlane.xlu0 %273
        %s275 = scalar_lea.vmem %s208, 8 [#allocation2]
        %v276 = vld [vmem:[%s275] sm:$0xff]
        %v277 = vsub.f32 %v266, %v276
        %v278 = vmul.f32 %v277, %v277
        %v279 = vsel %vm271, %v278, 0.0
        %280 = vadd.xlane.f32.xlu0 %v279
        %v281 = vpop.xlane.xlu0 %280
        %v282 = vmin.f32 %v274, %v281
        %s283 = scalar_lea.vmem %s208, 16 [#allocation2]
        %v284 = vld [vmem:[%s283] sm:$0xff]
        %v285 = vsub.f32 %v266, %v284
        %v286 = vmul.f32 %v285, %v285
        %v287 = vsel %vm271, %v286, 0.0
        %288 = vadd.xlane.f32.xlu0 %v287
        %v289 = vpop.xlane.xlu0 %288
        %v290 = vmin.f32 %v282, %v289
        %s291 = scalar_lea.vmem %s208, 24 [#allocation2]
        %v292 = vld [vmem:[%s291] sm:$0xff]
        %v293 = vsub.f32 %v266, %v292
        %v294 = vmul.f32 %v293, %v293
        %v295 = vsel %vm271, %v294, 0.0
        %296 = vadd.xlane.f32.xlu0 %v295
        %v297 = vpop.xlane.xlu0 %296
        %v298 = vmin.f32 %v290, %v297
        %v299 = vrsqrt.pop %v298
        %v300 = vmul.f32 %v298, %v299
        %vm301 = vcmp.eq.f32.partialorder %v298, inf
        %v302 = vsel %vm301, %v298, %v300
        %vm303 = vcmp.eq.f32.partialorder %v298, 0.0
        %v304 = vand.u32 %v298, 2147483648
        %v305 = vsel %vm303, %v304, %v302
        %v306 = vmul.f32 %v305, %v267
        %vm307 = vcmask 7168
        %v308 = vsel %vm307, %v306, 0.0
        %309 = vadd.xlane.f32.xlu0 %v308
        %v310 = vpop.xlane.xlu0 %309
        %v311 = vrot.slane %v310, 4
        %v312 = vadd.f32 %v310, %v311
        %v313 = vrot.slane %v312, 2
        %v314 = vadd.f32 %v312, %v313
        %v315 = vrot.slane %v314, 1
        %v316 = vadd.f32 %v314, %v315
        %s317 = vtos %v316
        %v318 = vstv %s317
        %vm319 = vcmask 0
        %320 = vst.msk [vmem:[%s265] sm:$0x1] %vm319, %v318
        %p321 = scmp.lt.s32.totalorder %s21, 1
        %s322 = scalar_select %p321, %s21, 1
        %p323 = scmp.lt.s32.totalorder %s22, 0
        %s324 = scalar_select %p323, %s22, 0
        %s325 = sadd.s32 %s324, %s322
        %s326 = scalar_lea.vmem %s3, %s325
        // Predicated region
        $region37: #{tpu_custom_call.1} parent=31 // pred_check
          %p327 = pneg %p133
        $region38: #{tpu_custom_call.1} parent=31 // pred_check_branch
          %329 = sbr.rel (%p327) target = $region40
        $region39: #{tpu_custom_call.1} parent=31 // pred_region
          _
        $region40: #{tpu_custom_call.1} parent=31 // pred_fallthru
          _
      $region32: #{tpu_custom_call.1} parent=5 // pred_fallthru
        _
      %p330 = scmp.le.s32.totalorder 2, %s12
      // Predicated region
      $region41: #{tpu_custom_call.1} parent=5 // pred_check
        %p331 = pneg %p330
      $region42: #{tpu_custom_call.1} parent=5 // pred_check_branch
        %333 = sbr.rel (%p331) target = $region44
      $region43: #{tpu_custom_call.1} parent=5 // pred_region
        %s334 = ssub.s32 %s12, 2
        // Predicated region
        $region45: #{tpu_custom_call.1} parent=43 // pred_check
          %p335 = pneg %p139
        $region46: #{tpu_custom_call.1} parent=43 // pred_check_branch
          %337 = sbr.rel (%p335) target = $region48
        $region47: #{tpu_custom_call.1} parent=43 // pred_region
          %p338 = scmp.lt.s32.totalorder %s23, 1
          %s339 = scalar_select %p338, %s23, 1
          %p340 = scmp.lt.s32.totalorder %s24, 0
          %s341 = scalar_select %p340, %s24, 0
          %s342 = sadd.s32 %s341, %s339
          %s343 = scalar_lea.vmem %s3, %s342
        $region48: #{tpu_custom_call.1} parent=43 // pred_fallthru
          _
      $region44: #{tpu_custom_call.1} parent=5 // pred_fallthru
        _
    $region6: #{tpu_custom_call.1} parent=1 // loop_footer
      %s16 = sadd.s32 1, %s12
    $region7: #{tpu_custom_call.1} parent=1 // loop_footer_branch
      %11 = sbr.rel target = $region3
    $region8: #{tpu_custom_call.1} parent=1 // loop_exit
      _
    %344 = vsyncpa [#allocation3], 1
    %s345 = scalar_lea.sflag [#allocation3], 1
    %346 = vsyncpa %s345, 1

</llo_original>
